<compile_context>
chip_gen: v7x
topology: tpu7x:2x2x1
jax: 0.10.0
libtpu: 0.0.40
codegen_flags: <defaults>
</compile_context>

<pallas_src>
import jax
import jax.numpy as jnp
from jax.experimental import pallas as pl
from jax.experimental.pallas import tpu as pltpu


# ~2 MiB per block: worst-case double-buffered footprint (2 in + 2 out blocks)
# is ~8 MiB, well under the 16 MiB default scoped VMEM on v5e (and the larger
# defaults on v6e/v7x).
_TILE_BYTES = 2 * 1024 * 1024


def _round_up_128(n: int) -> int:
    return ((n + 127) // 128) * 128


def _round_down_128(n: int) -> int:
    return max(128, (n // 128) * 128)


def _transpose_tile_kernel(x_ref, o_ref):
    # x_ref block: (TS, TD); o_ref block: (TD, TS)  (batch dim squeezed away)
    o_ref[...] = x_ref[...].T


def _transpose_batched_kernel(x_ref, o_ref):
    # x_ref block: (TB, S, D); o_ref block: (TB, D, S)
    o_ref[...] = jnp.swapaxes(x_ref[...], 1, 2)


def _balanced_tile(extent: int, cap: int) -> int:
    """Largest 128-multiple (or full extent) tile <= cap, rebalanced so the
    trailing edge tile is not a tiny, heavily-masked sliver."""
    if extent <= cap:
        return extent
    n = pl.cdiv(extent, cap)
    return min(extent, _round_up_128(pl.cdiv(extent, n)))


def pallas_transpose_12(x: jax.Array) -> jax.Array:
    """Swap axes 1 and 2 of a 3-D array using a tiled Pallas TPU kernel."""
    assert x.ndim == 3, "kernel path implemented for 3-D (B, S, D) inputs"
    B, S, D = x.shape

    # Sub-128 S makes every output store lane-masked (the documented biggest
    # store-path penalty); degenerate dims aren't worth a kernel either.
    # TODO(synk): the truly optimal path for those shapes is to fuse the axis
    # swap into the consumer's BlockSpec index_map instead of materializing.
    if B == 0 or D == 0 or S < 128:
        return jnp.swapaxes(x, 1, 2)

    itemsize = x.dtype.itemsize
    slab_bytes = S * D * itemsize
    bytes_accessed = 2 * B * S * D * itemsize
    cost = pl.CostEstimate(flops=0, transcendentals=0,
                           bytes_accessed=bytes_accessed)

    # ---- Path 1: batch-tiled (small per-batch slab, large B) ---------------
    if B > 1 and slab_bytes <= _TILE_BYTES // 2:
        tb_cap = max(1, _TILE_BYTES // slab_bytes)
        # At least 2 grid steps so both v7x TensorCores get work; rebalanced
        # so batch tiles are even.
        n_b = max(pl.cdiv(B, tb_cap), 2)
        TB = pl.cdiv(B, n_b)
        n_b = pl.cdiv(B, TB)

        return pl.pallas_call(
            _transpose_batched_kernel,
            out_shape=jax.ShapeDtypeStruct((B, D, S), x.dtype),
            grid_spec=pltpu.PrefetchScalarGridSpec(
                num_scalar_prefetch=0,
                grid=(n_b,),
                # Last two block dims equal the full array dims, so the
                # (8,128) divisibility rule is satisfied for any S, D.
                in_specs=[pl.BlockSpec((TB, S, D), lambda b: (b, 0, 0))],
                out_specs=pl.BlockSpec((TB, D, S), lambda b: (b, 0, 0)),
            ),
            compiler_params=pltpu.CompilerParams(
                dimension_semantics=("parallel",),
            ),
            cost_estimate=cost,
        )(x)

    # ---- Path 2: (S, D)-tiled with squeezed batch dim ----------------------
    budget_elems = _TILE_BYTES // itemsize

    if D * 128 <= budget_elems:
        # Full-D blocks: input DMAs read fully contiguous HBM rows.
        TD = D
        n_d = 1
        ts_cap = min(S, _round_down_128(budget_elems // D))
    else:
        # Very wide D: cap TD (128-aligned, rebalanced), minimal TS.
        td_cap = _round_down_128(budget_elems // 128)
        TD = _balanced_tile(D, td_cap)
        n_d = pl.cdiv(D, TD)
        ts_cap = 128

    TS = _balanced_tile(S, ts_cap)
    n_s = pl.cdiv(S, TS)

    # Keep both v7x TensorCores busy when the natural grid is a single step.
    if B * n_s * n_d == 1:
        if S >= 256:
            TS = _balanced_tile(S, _round_up_128(pl.cdiv(S, 2)))
            n_s = pl.cdiv(S, TS)
        elif D >= 256:
            TD = _balanced_tile(D, _round_up_128(pl.cdiv(D, 2)))
            n_d = pl.cdiv(D, TD)

    return pl.pallas_call(
        _transpose_tile_kernel,
        out_shape=jax.ShapeDtypeStruct((B, D, S), x.dtype),
        grid_spec=pltpu.PrefetchScalarGridSpec(
            num_scalar_prefetch=0,
            # D-tile axis innermost: input DMAs walk contiguous HBM rows.
            grid=(B, n_s, n_d),
            in_specs=[
                pl.BlockSpec((pl.Squeezed(), TS, TD), lambda b, s, d: (b, s, d)),
            ],
            out_specs=pl.BlockSpec((pl.Squeezed(), TD, TS), lambda b, s, d: (b, d, s)),
        ),
        compiler_params=pltpu.CompilerParams(
            dimension_semantics=("parallel", "parallel", "parallel"),
        ),
        cost_estimate=cost,
    )(x)


class Transpose:
    """JAX/Pallas equivalent of the PyTorch Transpose module."""

    def __init__(self, *dims, contiguous=False):
        assert len(dims) == 2, "Transpose expects exactly two dims"
        self.dims = dims
        # contiguous flag has no semantic effect in JAX (arrays are always
        # materialized); kept for API parity.
        self.contiguous = contiguous

    def __call__(self, x: jax.Array) -> jax.Array:
        d0, d1 = self.dims
        d0 = d0 % x.ndim
        d1 = d1 % x.ndim
        if d0 == d1:
            return x
        if x.ndim == 3 and {d0, d1} == {1, 2}:
            # Hot path (DualSG usage): Pallas kernel does the data movement.
            return pallas_transpose_12(x)
        # TODO(synk): general-rank / other-axis transposes fall back to plain
        # JAX glue (no dedicated Pallas kernel for those layouts).
        return jnp.swapaxes(x, d0, d1)


if __name__ == "__main__":
    mod = Transpose(1, 2, contiguous=True)

    # 1) DualSG-like small shape (S < 128): dispatch guard -> XLA fallback.
    x1 = jax.random.normal(jax.random.PRNGKey(0), (2, 8, 32), dtype=jnp.float32)
    y1 = jax.block_until_ready(mod(x1))
    assert y1.shape == (2, 32, 8), y1.shape
    assert jnp.array_equal(y1, jnp.swapaxes(x1, 1, 2)), "mismatch (fallback path)"

    # 2) Batch-tiled Pallas path: small per-batch slab packed TB>1 per block.
    x2 = jax.random.normal(jax.random.PRNGKey(0), (16, 128, 192), dtype=jnp.float32)
    y2 = jax.block_until_ready(mod(x2))
    assert y2.shape == (16, 192, 128), y2.shape
    assert jnp.array_equal(y2, jnp.swapaxes(x2, 1, 2)), "mismatch (batch-tiled path)"

    # 3) (S, D)-tiled Pallas path with a non-tile-multiple S edge (masked edge
    #    block), full-D contiguous input reads, rebalanced TS (640 -> 2x384).
    x3 = jax.random.normal(jax.random.PRNGKey(1), (2, 640, 1024), dtype=jnp.float32)
    y3 = jax.block_until_ready(mod(x3))
    assert y3.shape == (2, 1024, 640), y3.shape
    assert jnp.array_equal(y3, jnp.swapaxes(x3, 1, 2)), "mismatch (SD-tiled path)"

    # 4) bf16 input: byte-budget tiling adapts block element count to dtype.
    x4 = jax.random.normal(jax.random.PRNGKey(2), (4, 256, 256), dtype=jnp.bfloat16)
    y4 = jax.block_until_ready(mod(x4))
    assert y4.shape == (4, 256, 256), y4.shape
    assert jnp.array_equal(y4, jnp.swapaxes(x4, 1, 2)), "mismatch (bf16 path)"

    print("KERNEL_OK")
</pallas_src>

<mosaic_0001>
module attributes {stable_mosaic.version = 11 : i64} {
  func.func @_transpose_batched_kernel(%arg0: i32, %arg1: memref<8x128x192xf32, #tpu.memory_space<vmem>>, %arg2: memref<8x192x128xf32, #tpu.memory_space<vmem>>) attributes {dimension_semantics = [#tpu.dimension_semantics<parallel>], iteration_bounds = array<i64: 2>, scalar_prefetch = 0 : i64, scratch_operands = 0 : i64, tpu.core_type = #tpu.core_type<tc>, window_params = [{transform_indices = @transform_0, window_bounds = array<i64: 8, 128, 192>}, {transform_indices = @transform_1, window_bounds = array<i64: 8, 192, 128>}]} {
    %c0 = arith.constant 0 : index
    %c0_0 = arith.constant 0 : index
    %c0_1 = arith.constant 0 : index
    %0 = vector.load %arg1[%c0, %c0_0, %c0_1] : memref<8x128x192xf32, #tpu.memory_space<vmem>>, vector<8x128x192xf32>
    %1 = tpu.transpose %0, [0, 2, 1] : vector<8x128x192xf32> -> vector<8x192x128xf32>
    %c0_2 = arith.constant 0 : index
    %c0_3 = arith.constant 0 : index
    %c0_4 = arith.constant 0 : index
    %2 = vector.load %arg2[%c0_2, %c0_3, %c0_4] : memref<8x192x128xf32, #tpu.memory_space<vmem>>, vector<8x192x128xf32>
    tpu.vector_store %arg2[%c0_2, %c0_3, %c0_4], %1 {strides = array<i32>} : memref<8x192x128xf32, #tpu.memory_space<vmem>>, vector<8x192x128xf32>,
    return
  }
  func.func @transform_0(%arg0: i32) -> (i32, i32, i32) {
    %c0_i32 = arith.constant 0 : i32
    %c0_i32_0 = arith.constant 0 : i32
    %c0_i32_1 = arith.constant 0 : i32
    return %arg0, %c0_i32, %c0_i32_0 : i32, i32, i32
  }
  func.func @transform_1(%arg0: i32) -> (i32, i32, i32) {
    %c0_i32 = arith.constant 0 : i32
    %c0_i32_0 = arith.constant 0 : i32
    %c0_i32_1 = arith.constant 0 : i32
    return %arg0, %c0_i32, %c0_i32_0 : i32, i32, i32
  }
}

</mosaic_0001>

<llo_original>
// kernel: tpu_custom_call.1
$region0: #{tpu_custom_call.1}
  #allocation0 [shape = 'u32[]', space=smem, size = 0x4, offset = 0x4, fixed_abs, tag = 'smem constant byte address 0x4 - core index']
  #allocation1 [shape = 'u32[144,128]{1,0:T(1,128)}', space=vmem, size = 0x12000, scoped, tag = 'internal scratch']
  %s0 = inlined_call_operand.vmem [shape: f32[16,128,192], index: 0, kind: input, shape index: {}]
  %s1 = inlined_call_operand.hbm [shape: f32[16,192,128], index: 1, kind: output, shape index: {}]
  %s2 = sld [smem:[#allocation0]]
  $region37: #{tpu_custom_call.1} parent=0
    _
  %s4 = ssub.s32 1, %s2
  %s5 = scalar_select 0, %s4, %s2
  $region1: #{tpu_custom_call.1} parent=0
    #allocation2 [shape = 'u8[1572864]{0}', space=vmem, size = 0x180000, scoped, tag = 'output window, operand 0']
    #allocation3 [shape = 's32[2]{0}', space=sflag, size = 0x8, scoped, tag = 'scoped memory for tpu_custom_call.1']
    %6 = vsyncpa [#allocation3], 0
    %s7 = scalar_lea.sflag [#allocation3], 1
    %8 = vsyncpa %s7, 0
    loop: start=0, step=1, limit=4
    $region2: #{tpu_custom_call.1} parent=1 // loop_pre_header
      _
    $region3: #{tpu_custom_call.1} parent=1 // loop_header
      %s10 = sphi 0, %s14
      %p11 = scmp.ge.s32.totalorder %s10, 4
      %s20 = sphi 0, %s22
      %s23 = sphi 0, %s20
      %s24 = sphi 0, %s23
      %s40 = sphi 0, %s24
      %s46 = sphi 0, %s48
      %s49 = sphi 0, %s46
      %s50 = sphi 0, %s49
      %s66 = sphi 0, %s50
    $region4: #{tpu_custom_call.1} parent=1 // loop_header_branch
      %13 = sbr.rel (%p11) target = $region8
    $region5: #{tpu_custom_call.1} parent=1 // loop_body
      %s15 = ssub.s32 %s10, 1
      %s16 = ssub.s32 %s10, 2
      %s17 = sadd.s32 %s10, 1
      %s18 = ssub.s32 %s10, %s17
      %p19 = scmp.eq.s32.totalorder %s18, 0
      %s21 = sadd.s32 %s20, 1
      %s22 = scalar_select %p19, %s20, %s21
      %p25 = pneg %p19
      %p26 = scmp.eq.s32.totalorder %s10, 1
      %p27 = por %p25, %p26
      %p28 = scmp.ne.s32.totalorder %s20, %s23
      %p29 = scmp.eq.s32.totalorder %s10, 0
      %p30 = por %p28, %p29
      %p31 = scmp.ne.s32.totalorder %s20, %s23
      %p32 = scmp.eq.s32.totalorder %s15, 1
      %p33 = por %p31, %p32
      %p34 = scmp.ne.s32.totalorder %s23, %s24
      %p35 = scmp.eq.s32.totalorder %s15, 0
      %p36 = por %p34, %p35
      %p37 = scmp.ne.s32.totalorder %s23, %s24
      %p38 = scmp.eq.s32.totalorder %s16, 1
      %p39 = por %p37, %p38
      %p41 = scmp.ne.s32.totalorder %s24, %s40
      %p42 = scmp.eq.s32.totalorder %s16, 0
      %p43 = por %p41, %p42
      %s44 = ssub.s32 %s10, %s17
      %p45 = scmp.eq.s32.totalorder %s44, 0
      %s47 = sadd.s32 %s46, 1
      %s48 = scalar_select %p45, %s46, %s47
      %p51 = pneg %p45
      %p52 = scmp.eq.s32.totalorder %s10, 1
      %p53 = por %p51, %p52
      %p54 = scmp.ne.s32.totalorder %s46, %s49
      %p55 = scmp.eq.s32.totalorder %s10, 0
      %p56 = por %p54, %p55
      %p57 = scmp.ne.s32.totalorder %s46, %s49
      %p58 = scmp.eq.s32.totalorder %s15, 1
      %p59 = por %p57, %p58
      %p60 = scmp.ne.s32.totalorder %s49, %s50
      %p61 = scmp.eq.s32.totalorder %s15, 0
      %p62 = por %p60, %p61
      %p63 = scmp.ne.s32.totalorder %s49, %s50
      %p64 = scmp.eq.s32.totalorder %s16, 1
      %p65 = por %p63, %p64
      %p67 = scmp.ne.s32.totalorder %s50, %s66
      %p68 = scmp.eq.s32.totalorder %s16, 0
      %p69 = por %p67, %p68
      %p70 = scmp.le.s32.totalorder 1, %s10
      %p71 = scmp.lt.s32.totalorder %s10, 3
      %p72 = pnand %p70, %p71
      %p73 = pneg %p72
      // Predicated region
      $region9: #{tpu_custom_call.1} parent=5 // pred_check
        _
      $region10: #{tpu_custom_call.1} parent=5 // pred_check_branch
        %75 = sbr.rel (%p72) target = $region12
      $region11: #{tpu_custom_call.1} parent=5 // pred_region
        %s76 = ssub.s32 %s10, 1
      $region12: #{tpu_custom_call.1} parent=5 // pred_fallthru
        _
      %p77 = scmp.lt.s32.totalorder %s10, 2
      // Predicated region
      $region13: #{tpu_custom_call.1} parent=5 // pred_check
        %p78 = pneg %p77
      $region14: #{tpu_custom_call.1} parent=5 // pred_check_branch
        %80 = sbr.rel (%p78) target = $region16
      $region15: #{tpu_custom_call.1} parent=5 // pred_region
        // Predicated region
        $region17: #{tpu_custom_call.1} parent=15 // pred_check
          %p81 = pneg %p30
        $region18: #{tpu_custom_call.1} parent=15 // pred_check_branch
          %83 = sbr.rel (%p81) target = $region20
        $region19: #{tpu_custom_call.1} parent=15 // pred_region
          %s84 = smul.u32 8, %s10
          %p85 = scmp.lt.s32.totalorder %s84, 15
          %s86 = scalar_select %p85, %s84, 15
          %s87 = smul.addr %s86, 32
          %s88 = smul.addr %s87, 8
          %s89 = scalar_lea.vmem %s0, %s88
          %s90 = smul.u32 8, %s10
        $region20: #{tpu_custom_call.1} parent=15 // pred_fallthru
          _
      $region16: #{tpu_custom_call.1} parent=5 // pred_fallthru
        _
      %p91 = scmp.le.s32.totalorder 1, %s10
      %p92 = scmp.lt.s32.totalorder %s10, 3
      %p93 = pnand %p91, %p92
      %p94 = pneg %p93
      // Predicated region
      $region21: #{tpu_custom_call.1} parent=5 // pred_check
        _
      $region22: #{tpu_custom_call.1} parent=5 // pred_check_branch
        %96 = sbr.rel (%p93) target = $region24
      $region23: #{tpu_custom_call.1} parent=5 // pred_region
        %s97 = ssub.s32 %s10, 1
        %s98 = smul.u32 8, %s15
        %p99 = scmp.lt.s32.totalorder %s98, 15
        %s100 = scalar_select %p99, %s98, 15
        %s101 = smul.addr %s100, 32
        %s102 = smul.addr %s101, 8
        %s103 = scalar_lea.vmem %s0, %s102
        %p104 = pneg %p36
        %p105 = pneg %p33
        %p106 = pneg %p62
        %p107 = pneg %p59
        %s108 = sand.u32 %s49, 1
        %s109 = scalar_lea.sflag [#allocation3], %s108
        %s110 = sand.u32 %s49, 1
        %s111 = smul.addr %s110, 1536
        %s112 = scalar_lea.vmem [#allocation2], %s111
        %s113 = smul.u32 8, %s15
        %p114 = scmp.lt.s32.totalorder %s113, 15
        %s115 = scalar_select %p114, %s113, 15
        %s116 = smul.addr %s115, 32
        %s117 = smul.addr %s116, 8
        %s118 = scalar_lea.vmem %s0, %s117
        %s119 = smul.u32 8, %s15
        %s120 = smul.u32 8, %s15
        %v121 = vld [vmem:[%s118] sm:$0xff]
        %v122 = vld [vmem:[%s118 + $0x8] sm:$0xff]
        %v123 = vld [vmem:[%s118 + $0x10] sm:$0xff]
        %v124 = vld [vmem:[%s118 + $0x18] sm:$0xff]
        %v125 = vld [vmem:[%s118 + $0x20] sm:$0xff]
        %v126 = vld [vmem:[%s118 + $0x28] sm:$0xff]
        %v127 = vld [vmem:[%s118 + $0x30] sm:$0xff]
        %v128 = vld [vmem:[%s118 + $0x38] sm:$0xff]
        %v129 = vld [vmem:[%s118 + $0x40] sm:$0xff]
        %v130 = vld [vmem:[%s118 + $0x48] sm:$0xff]
        %v131 = vld [vmem:[%s118 + $0x50] sm:$0xff]
        %v132 = vld [vmem:[%s118 + $0x58] sm:$0xff]
        %v133 = vld [vmem:[%s118 + $0x60] sm:$0xff]
        %v134 = vld [vmem:[%s118 + $0x68] sm:$0xff]
        %v135 = vld [vmem:[%s118 + $0x70] sm:$0xff]
        %v136 = vld [vmem:[%s118 + $0x78] sm:$0xff]
        %v137 = vld [vmem:[%s118 + $0x80] sm:$0xff]
        %v138 = vld [vmem:[%s118 + $0x88] sm:$0xff]
        %v139 = vld [vmem:[%s118 + $0x90] sm:$0xff]
        %v140 = vld [vmem:[%s118 + $0x98] sm:$0xff]
        %v141 = vld [vmem:[%s118 + $0xa0] sm:$0xff]
        %v142 = vld [vmem:[%s118 + $0xa8] sm:$0xff]
        %v143 = vld [vmem:[%s118 + $0xb0] sm:$0xff]
        %v144 = vld [vmem:[%s118 + $0xb8] sm:$0xff]
        %v145 = vld [vmem:[%s118 + $0xc0] sm:$0xff]
        %v146 = vld [vmem:[%s118 + $0xc8] sm:$0xff]
        %v147 = vld [vmem:[%s118 + $0xd0] sm:$0xff]
        %v148 = vld [vmem:[%s118 + $0xd8] sm:$0xff]
        %v149 = vld [vmem:[%s118 + $0xe0] sm:$0xff]
        %v150 = vld [vmem:[%s118 + $0xe8] sm:$0xff]
        %v151 = vld [vmem:[%s118 + $0xf0] sm:$0xff]
        %v152 = vld [vmem:[%s118 + $0xf8] sm:$0xff]
        %v153 = vld [vmem:[%s118 + $0x100] sm:$0xff]
        %v154 = vld [vmem:[%s118 + $0x108] sm:$0xff]
        %v155 = vld [vmem:[%s118 + $0x110] sm:$0xff]
        %v156 = vld [vmem:[%s118 + $0x118] sm:$0xff]
        %v157 = vld [vmem:[%s118 + $0x120] sm:$0xff]
        %v158 = vld [vmem:[%s118 + $0x128] sm:$0xff]
        %v159 = vld [vmem:[%s118 + $0x130] sm:$0xff]
        %v160 = vld [vmem:[%s118 + $0x138] sm:$0xff]
        %v161 = vld [vmem:[%s118 + $0x140] sm:$0xff]
        %v162 = vld [vmem:[%s118 + $0x148] sm:$0xff]
        %v163 = vld [vmem:[%s118 + $0x150] sm:$0xff]
        %v164 = vld [vmem:[%s118 + $0x158] sm:$0xff]
        %v165 = vld [vmem:[%s118 + $0x160] sm:$0xff]
        %v166 = vld [vmem:[%s118 + $0x168] sm:$0xff]
        %v167 = vld [vmem:[%s118 + $0x170] sm:$0xff]
        %v168 = vld [vmem:[%s118 + $0x178] sm:$0xff]
        %v169 = vld [vmem:[%s118 + $0x180] sm:$0xff]
        %v170 = vld [vmem:[%s118 + $0x188] sm:$0xff]
        %v171 = vld [vmem:[%s118 + $0x190] sm:$0xff]
        %v172 = vld [vmem:[%s118 + $0x198] sm:$0xff]
        %v173 = vld [vmem:[%s118 + $0x1a0] sm:$0xff]
        %v174 = vld [vmem:[%s118 + $0x1a8] sm:$0xff]
        %v175 = vld [vmem:[%s118 + $0x1b0] sm:$0xff]
        %v176 = vld [vmem:[%s118 + $0x1b8] sm:$0xff]
        %v177 = vld [vmem:[%s118 + $0x1c0] sm:$0xff]
        %v178 = vld [vmem:[%s118 + $0x1c8] sm:$0xff]
        %v179 = vld [vmem:[%s118 + $0x1d0] sm:$0xff]
        %v180 = vld [vmem:[%s118 + $0x1d8] sm:$0xff]
        %v181 = vld [vmem:[%s118 + $0x1e0] sm:$0xff]
        %v182 = vld [vmem:[%s118 + $0x1e8] sm:$0xff]
        %v183 = vld [vmem:[%s118 + $0x1f0] sm:$0xff]
        %v184 = vld [vmem:[%s118 + $0x1f8] sm:$0xff]
        %v185 = vld [vmem:[%s118 + $0x200] sm:$0xff]
        %v186 = vld [vmem:[%s118 + $0x208] sm:$0xff]
        %v187 = vld [vmem:[%s118 + $0x210] sm:$0xff]
        %v188 = vld [vmem:[%s118 + $0x218] sm:$0xff]
        %v189 = vld [vmem:[%s118 + $0x220] sm:$0xff]
        %v190 = vld [vmem:[%s118 + $0x228] sm:$0xff]
        %v191 = vld [vmem:[%s118 + $0x230] sm:$0xff]
        %v192 = vld [vmem:[%s118 + $0x238] sm:$0xff]
        %v193 = vld [vmem:[%s118 + $0x240] sm:$0xff]
        %v194 = vld [vmem:[%s118 + $0x248] sm:$0xff]
        %v195 = vld [vmem:[%s118 + $0x250] sm:$0xff]
        %v196 = vld [vmem:[%s118 + $0x258] sm:$0xff]
        %v197 = vld [vmem:[%s118 + $0x260] sm:$0xff]
        %v198 = vld [vmem:[%s118 + $0x268] sm:$0xff]
        %v199 = vld [vmem:[%s118 + $0x270] sm:$0xff]
        %v200 = vld [vmem:[%s118 + $0x278] sm:$0xff]
        %v201 = vld [vmem:[%s118 + $0x280] sm:$0xff]
        %v202 = vld [vmem:[%s118 + $0x288] sm:$0xff]
        %v203 = vld [vmem:[%s118 + $0x290] sm:$0xff]
        %v204 = vld [vmem:[%s118 + $0x298] sm:$0xff]
        %v205 = vld [vmem:[%s118 + $0x2a0] sm:$0xff]
        %v206 = vld [vmem:[%s118 + $0x2a8] sm:$0xff]
        %v207 = vld [vmem:[%s118 + $0x2b0] sm:$0xff]
        %v208 = vld [vmem:[%s118 + $0x2b8] sm:$0xff]
        %v209 = vld [vmem:[%s118 + $0x2c0] sm:$0xff]
        %v210 = vld [vmem:[%s118 + $0x2c8] sm:$0xff]
        %v211 = vld [vmem:[%s118 + $0x2d0] sm:$0xff]
        %v212 = vld [vmem:[%s118 + $0x2d8] sm:$0xff]
        %v213 = vld [vmem:[%s118 + $0x2e0] sm:$0xff]
        %v214 = vld [vmem:[%s118 + $0x2e8] sm:$0xff]
        %v215 = vld [vmem:[%s118 + $0x2f0] sm:$0xff]
        %v216 = vld [vmem:[%s118 + $0x2f8] sm:$0xff]
        %v217 = vld [vmem:[%s118 + $0x300] sm:$0xff]
        %v218 = vld [vmem:[%s118 + $0x308] sm:$0xff]
        %v219 = vld [vmem:[%s118 + $0x310] sm:$0xff]
        %v220 = vld [vmem:[%s118 + $0x318] sm:$0xff]
        %v221 = vld [vmem:[%s118 + $0x320] sm:$0xff]
        %v222 = vld [vmem:[%s118 + $0x328] sm:$0xff]
        %v223 = vld [vmem:[%s118 + $0x330] sm:$0xff]
        %v224 = vld [vmem:[%s118 + $0x338] sm:$0xff]
        %v225 = vld [vmem:[%s118 + $0x340] sm:$0xff]
        %v226 = vld [vmem:[%s118 + $0x348] sm:$0xff]
        %v227 = vld [vmem:[%s118 + $0x350] sm:$0xff]
        %v228 = vld [vmem:[%s118 + $0x358] sm:$0xff]
        %v229 = vld [vmem:[%s118 + $0x360] sm:$0xff]
        %v230 = vld [vmem:[%s118 + $0x368] sm:$0xff]
        %v231 = vld [vmem:[%s118 + $0x370] sm:$0xff]
        %v232 = vld [vmem:[%s118 + $0x378] sm:$0xff]
        %v233 = vld [vmem:[%s118 + $0x380] sm:$0xff]
        %v234 = vld [vmem:[%s118 + $0x388] sm:$0xff]
        %v235 = vld [vmem:[%s118 + $0x390] sm:$0xff]
        %v236 = vld [vmem:[%s118 + $0x398] sm:$0xff]
        %v237 = vld [vmem:[%s118 + $0x3a0] sm:$0xff]
        %v238 = vld [vmem:[%s118 + $0x3a8] sm:$0xff]
        %v239 = vld [vmem:[%s118 + $0x3b0] sm:$0xff]
        %v240 = vld [vmem:[%s118 + $0x3b8] sm:$0xff]
        %v241 = vld [vmem:[%s118 + $0x3c0] sm:$0xff]
        %v242 = vld [vmem:[%s118 + $0x3c8] sm:$0xff]
        %v243 = vld [vmem:[%s118 + $0x3d0] sm:$0xff]
        %v244 = vld [vmem:[%s118 + $0x3d8] sm:$0xff]
        %v245 = vld [vmem:[%s118 + $0x3e0] sm:$0xff]
        %v246 = vld [vmem:[%s118 + $0x3e8] sm:$0xff]
        %v247 = vld [vmem:[%s118 + $0x3f0] sm:$0xff]
        %v248 = vld [vmem:[%s118 + $0x3f8] sm:$0xff]
        %v249 = vld [vmem:[%s118 + $0x400] sm:$0xff]
        %v250 = vld [vmem:[%s118 + $0x408] sm:$0xff]
        %v251 = vld [vmem:[%s118 + $0x410] sm:$0xff]
        %v252 = vld [vmem:[%s118 + $0x418] sm:$0xff]
        %v253 = vld [vmem:[%s118 + $0x420] sm:$0xff]
        %v254 = vld [vmem:[%s118 + $0x428] sm:$0xff]
        %v255 = vld [vmem:[%s118 + $0x430] sm:$0xff]
        %v256 = vld [vmem:[%s118 + $0x438] sm:$0xff]
        %v257 = vld [vmem:[%s118 + $0x440] sm:$0xff]
        %v258 = vld [vmem:[%s118 + $0x448] sm:$0xff]
        %v259 = vld [vmem:[%s118 + $0x450] sm:$0xff]
        %v260 = vld [vmem:[%s118 + $0x458] sm:$0xff]
        %v261 = vld [vmem:[%s118 + $0x460] sm:$0xff]
        %v262 = vld [vmem:[%s118 + $0x468] sm:$0xff]
        %v263 = vld [vmem:[%s118 + $0x470] sm:$0xff]
        %v264 = vld [vmem:[%s118 + $0x478] sm:$0xff]
        %v265 = vld [vmem:[%s118 + $0x480] sm:$0xff]
        %v266 = vld [vmem:[%s118 + $0x488] sm:$0xff]
        %v267 = vld [vmem:[%s118 + $0x490] sm:$0xff]
        %v268 = vld [vmem:[%s118 + $0x498] sm:$0xff]
        %v269 = vld [vmem:[%s118 + $0x4a0] sm:$0xff]
        %v270 = vld [vmem:[%s118 + $0x4a8] sm:$0xff]
        %v271 = vld [vmem:[%s118 + $0x4b0] sm:$0xff]
        %v272 = vld [vmem:[%s118 + $0x4b8] sm:$0xff]
        %v273 = vld [vmem:[%s118 + $0x4c0] sm:$0xff]
        %v274 = vld [vmem:[%s118 + $0x4c8] sm:$0xff]
        %v275 = vld [vmem:[%s118 + $0x4d0] sm:$0xff]
        %v276 = vld [vmem:[%s118 + $0x4d8] sm:$0xff]
        %v277 = vld [vmem:[%s118 + $0x4e0] sm:$0xff]
        %v278 = vld [vmem:[%s118 + $0x4e8] sm:$0xff]
        %v279 = vld [vmem:[%s118 + $0x4f0] sm:$0xff]
        %v280 = vld [vmem:[%s118 + $0x4f8] sm:$0xff]
        %v281 = vld [vmem:[%s118 + $0x500] sm:$0xff]
        %v282 = vld [vmem:[%s118 + $0x508] sm:$0xff]
        %v283 = vld [vmem:[%s118 + $0x510] sm:$0xff]
        %v284 = vld [vmem:[%s118 + $0x518] sm:$0xff]
        %v285 = vld [vmem:[%s118 + $0x520] sm:$0xff]
        %v286 = vld [vmem:[%s118 + $0x528] sm:$0xff]
        %v287 = vld [vmem:[%s118 + $0x530] sm:$0xff]
        %v288 = vld [vmem:[%s118 + $0x538] sm:$0xff]
        %v289 = vld [vmem:[%s118 + $0x540] sm:$0xff]
        %v290 = vld [vmem:[%s118 + $0x548] sm:$0xff]
        %v291 = vld [vmem:[%s118 + $0x550] sm:$0xff]
        %v292 = vld [vmem:[%s118 + $0x558] sm:$0xff]
        %v293 = vld [vmem:[%s118 + $0x560] sm:$0xff]
        %v294 = vld [vmem:[%s118 + $0x568] sm:$0xff]
        %v295 = vld [vmem:[%s118 + $0x570] sm:$0xff]
        %v296 = vld [vmem:[%s118 + $0x578] sm:$0xff]
        %v297 = vld [vmem:[%s118 + $0x580] sm:$0xff]
        %v298 = vld [vmem:[%s118 + $0x588] sm:$0xff]
        %v299 = vld [vmem:[%s118 + $0x590] sm:$0xff]
        %v300 = vld [vmem:[%s118 + $0x598] sm:$0xff]
        %v301 = vld [vmem:[%s118 + $0x5a0] sm:$0xff]
        %v302 = vld [vmem:[%s118 + $0x5a8] sm:$0xff]
        %v303 = vld [vmem:[%s118 + $0x5b0] sm:$0xff]
        %v304 = vld [vmem:[%s118 + $0x5b8] sm:$0xff]
        %v305 = vld [vmem:[%s118 + $0x5c0] sm:$0xff]
        %v306 = vld [vmem:[%s118 + $0x5c8] sm:$0xff]
        %v307 = vld [vmem:[%s118 + $0x5d0] sm:$0xff]
        %v308 = vld [vmem:[%s118 + $0x5d8] sm:$0xff]
        %v309 = vld [vmem:[%s118 + $0x5e0] sm:$0xff]
        %v310 = vld [vmem:[%s118 + $0x5e8] sm:$0xff]
        %v311 = vld [vmem:[%s118 + $0x5f0] sm:$0xff]
        %v312 = vld [vmem:[%s118 + $0x5f8] sm:$0xff]
        %v313 = vld [vmem:[%s118 + $0x600] sm:$0xff]
        %v314 = vld [vmem:[%s118 + $0x608] sm:$0xff]
        %v315 = vld [vmem:[%s118 + $0x610] sm:$0xff]
        %v316 = vld [vmem:[%s118 + $0x618] sm:$0xff]
        %v317 = vld [vmem:[%s118 + $0x620] sm:$0xff]
        %v318 = vld [vmem:[%s118 + $0x628] sm:$0xff]
        %v319 = vld [vmem:[%s118 + $0x630] sm:$0xff]
        %v320 = vld [vmem:[%s118 + $0x638] sm:$0xff]
        %v321 = vld [vmem:[%s118 + $0x640] sm:$0xff]
        %v322 = vld [vmem:[%s118 + $0x648] sm:$0xff]
        %v323 = vld [vmem:[%s118 + $0x650] sm:$0xff]
        %v324 = vld [vmem:[%s118 + $0x658] sm:$0xff]
        %v325 = vld [vmem:[%s118 + $0x660] sm:$0xff]
        %v326 = vld [vmem:[%s118 + $0x668] sm:$0xff]
        %v327 = vld [vmem:[%s118 + $0x670] sm:$0xff]
        %v328 = vld [vmem:[%s118 + $0x678] sm:$0xff]
        %v329 = vld [vmem:[%s118 + $0x680] sm:$0xff]
        %v330 = vld [vmem:[%s118 + $0x688] sm:$0xff]
        %v331 = vld [vmem:[%s118 + $0x690] sm:$0xff]
        %v332 = vld [vmem:[%s118 + $0x698] sm:$0xff]
        %v333 = vld [vmem:[%s118 + $0x6a0] sm:$0xff]
        %v334 = vld [vmem:[%s118 + $0x6a8] sm:$0xff]
        %v335 = vld [vmem:[%s118 + $0x6b0] sm:$0xff]
        %v336 = vld [vmem:[%s118 + $0x6b8] sm:$0xff]
        %v337 = vld [vmem:[%s118 + $0x6c0] sm:$0xff]
        %v338 = vld [vmem:[%s118 + $0x6c8] sm:$0xff]
        %v339 = vld [vmem:[%s118 + $0x6d0] sm:$0xff]
        %v340 = vld [vmem:[%s118 + $0x6d8] sm:$0xff]
        %v341 = vld [vmem:[%s118 + $0x6e0] sm:$0xff]
        %v342 = vld [vmem:[%s118 + $0x6e8] sm:$0xff]
        %v343 = vld [vmem:[%s118 + $0x6f0] sm:$0xff]
        %v344 = vld [vmem:[%s118 + $0x6f8] sm:$0xff]
        %v345 = vld [vmem:[%s118 + $0x700] sm:$0xff]
        %v346 = vld [vmem:[%s118 + $0x708] sm:$0xff]
        %v347 = vld [vmem:[%s118 + $0x710] sm:$0xff]
        %v348 = vld [vmem:[%s118 + $0x718] sm:$0xff]
        %v349 = vld [vmem:[%s118 + $0x720] sm:$0xff]
        %v350 = vld [vmem:[%s118 + $0x728] sm:$0xff]
        %v351 = vld [vmem:[%s118 + $0x730] sm:$0xff]
        %v352 = vld [vmem:[%s118 + $0x738] sm:$0xff]
        %v353 = vld [vmem:[%s118 + $0x740] sm:$0xff]
        %v354 = vld [vmem:[%s118 + $0x748] sm:$0xff]
        %v355 = vld [vmem:[%s118 + $0x750] sm:$0xff]
        %v356 = vld [vmem:[%s118 + $0x758] sm:$0xff]
        %v357 = vld [vmem:[%s118 + $0x760] sm:$0xff]
        %v358 = vld [vmem:[%s118 + $0x768] sm:$0xff]
        %v359 = vld [vmem:[%s118 + $0x770] sm:$0xff]
        %v360 = vld [vmem:[%s118 + $0x778] sm:$0xff]
        %v361 = vld [vmem:[%s118 + $0x780] sm:$0xff]
        %v362 = vld [vmem:[%s118 + $0x788] sm:$0xff]
        %v363 = vld [vmem:[%s118 + $0x790] sm:$0xff]
        %v364 = vld [vmem:[%s118 + $0x798] sm:$0xff]
        %v365 = vld [vmem:[%s118 + $0x7a0] sm:$0xff]
        %v366 = vld [vmem:[%s118 + $0x7a8] sm:$0xff]
        %v367 = vld [vmem:[%s118 + $0x7b0] sm:$0xff]
        %v368 = vld [vmem:[%s118 + $0x7b8] sm:$0xff]
        %v369 = vld [vmem:[%s118 + $0x7c0] sm:$0xff]
        %v370 = vld [vmem:[%s118 + $0x7c8] sm:$0xff]
        %v371 = vld [vmem:[%s118 + $0x7d0] sm:$0xff]
        %v372 = vld [vmem:[%s118 + $0x7d8] sm:$0xff]
        %v373 = vld [vmem:[%s118 + $0x7e0] sm:$0xff]
        %v374 = vld [vmem:[%s118 + $0x7e8] sm:$0xff]
        %v375 = vld [vmem:[%s118 + $0x7f0] sm:$0xff]
        %v376 = vld [vmem:[%s118 + $0x7f8] sm:$0xff]
        %377 = vxpose.xlu0.b32.start [1/16] %v121, 128
        %378 = vxpose.xlu0.b32.cont [2/16] %v123, 128
        %379 = vxpose.xlu0.b32.cont [3/16] %v125, 128
        %380 = vxpose.xlu0.b32.cont [4/16] %v127, 128
        %381 = vxpose.xlu0.b32.cont [5/16] %v129, 128
        %382 = vxpose.xlu0.b32.cont [6/16] %v131, 128
        %383 = vxpose.xlu0.b32.cont [7/16] %v133, 128
        %384 = vxpose.xlu0.b32.cont [8/16] %v135, 128
        %385 = vxpose.xlu0.b32.cont [9/16] %v137, 128
        %386 = vxpose.xlu0.b32.cont [10/16] %v139, 128
        %387 = vxpose.xlu0.b32.cont [11/16] %v141, 128
        %388 = vxpose.xlu0.b32.cont [12/16] %v143, 128
        %389 = vxpose.xlu0.b32.cont [13/16] %v145, 128
        %390 = vxpose.xlu0.b32.cont [14/16] %v147, 128
        %391 = vxpose.xlu0.b32.cont [15/16] %v149, 128
        %392 = vxpose.xlu0.b32.end [16/16] %v151, 128
        %v393 = vpop.trf.xlu0
        %v394 = vpop.trf.xlu0
        %v395 = vpop.trf.xlu0
        %v396 = vpop.trf.xlu0
        %v397 = vpop.trf.xlu0
        %v398 = vpop.trf.xlu0
        %v399 = vpop.trf.xlu0
        %v400 = vpop.trf.xlu0
        %v401 = vpop.trf.xlu0
        %v402 = vpop.trf.xlu0
        %v403 = vpop.trf.xlu0
        %v404 = vpop.trf.xlu0
        %v405 = vpop.trf.xlu0
        %v406 = vpop.trf.xlu0
        %v407 = vpop.trf.xlu0
        %v408 = vpop.trf.xlu0
        %409 = vxpose.xlu0.b32.start [1/16] %v122, 128
        %410 = vxpose.xlu0.b32.cont [2/16] %v124, 128
        %411 = vxpose.xlu0.b32.cont [3/16] %v126, 128
        %412 = vxpose.xlu0.b32.cont [4/16] %v128, 128
        %413 = vxpose.xlu0.b32.cont [5/16] %v130, 128
        %414 = vxpose.xlu0.b32.cont [6/16] %v132, 128
        %415 = vxpose.xlu0.b32.cont [7/16] %v134, 128
        %416 = vxpose.xlu0.b32.cont [8/16] %v136, 128
        %417 = vxpose.xlu0.b32.cont [9/16] %v138, 128
        %418 = vxpose.xlu0.b32.cont [10/16] %v140, 128
        %419 = vxpose.xlu0.b32.cont [11/16] %v142, 128
        %420 = vxpose.xlu0.b32.cont [12/16] %v144, 128
        %421 = vxpose.xlu0.b32.cont [13/16] %v146, 128
        %422 = vxpose.xlu0.b32.cont [14/16] %v148, 128
        %423 = vxpose.xlu0.b32.cont [15/16] %v150, 128
        %424 = vxpose.xlu0.b32.end [16/16] %v152, 128
        %v425 = vpop.trf.xlu0
        %v426 = vpop.trf.xlu0
        %v427 = vpop.trf.xlu0
        %v428 = vpop.trf.xlu0
        %v429 = vpop.trf.xlu0
        %v430 = vpop.trf.xlu0
        %v431 = vpop.trf.xlu0
        %v432 = vpop.trf.xlu0
        %v433 = vpop.trf.xlu0
        %v434 = vpop.trf.xlu0
        %v435 = vpop.trf.xlu0
        %v436 = vpop.trf.xlu0
        %v437 = vpop.trf.xlu0
        %v438 = vpop.trf.xlu0
        %v439 = vpop.trf.xlu0
        %v440 = vpop.trf.xlu0
        %441 = vxpose.xlu0.b32.start [1/16] %v153, 128
        %442 = vxpose.xlu0.b32.cont [2/16] %v155, 128
        %443 = vxpose.xlu0.b32.cont [3/16] %v157, 128
        %444 = vxpose.xlu0.b32.cont [4/16] %v159, 128
        %445 = vxpose.xlu0.b32.cont [5/16] %v161, 128
        %446 = vxpose.xlu0.b32.cont [6/16] %v163, 128
        %447 = vxpose.xlu0.b32.cont [7/16] %v165, 128
        %448 = vxpose.xlu0.b32.cont [8/16] %v167, 128
        %449 = vxpose.xlu0.b32.cont [9/16] %v169, 128
        %450 = vxpose.xlu0.b32.cont [10/16] %v171, 128
        %451 = vxpose.xlu0.b32.cont [11/16] %v173, 128
        %452 = vxpose.xlu0.b32.cont [12/16] %v175, 128
        %453 = vxpose.xlu0.b32.cont [13/16] %v177, 128
        %454 = vxpose.xlu0.b32.cont [14/16] %v179, 128
        %455 = vxpose.xlu0.b32.cont [15/16] %v181, 128
        %456 = vxpose.xlu0.b32.end [16/16] %v183, 128
        %v457 = vpop.trf.xlu0
        %v458 = vpop.trf.xlu0
        %v459 = vpop.trf.xlu0
        %v460 = vpop.trf.xlu0
        %v461 = vpop.trf.xlu0
        %v462 = vpop.trf.xlu0
        %v463 = vpop.trf.xlu0
        %v464 = vpop.trf.xlu0
        %v465 = vpop.trf.xlu0
        %v466 = vpop.trf.xlu0
        %v467 = vpop.trf.xlu0
        %v468 = vpop.trf.xlu0
        %v469 = vpop.trf.xlu0
        %v470 = vpop.trf.xlu0
        %v471 = vpop.trf.xlu0
        %v472 = vpop.trf.xlu0
        %473 = vxpose.xlu0.b32.start [1/16] %v154, 128
        %474 = vxpose.xlu0.b32.cont [2/16] %v156, 128
        %475 = vxpose.xlu0.b32.cont [3/16] %v158, 128
        %476 = vxpose.xlu0.b32.cont [4/16] %v160, 128
        %477 = vxpose.xlu0.b32.cont [5/16] %v162, 128
        %478 = vxpose.xlu0.b32.cont [6/16] %v164, 128
        %479 = vxpose.xlu0.b32.cont [7/16] %v166, 128
        %480 = vxpose.xlu0.b32.cont [8/16] %v168, 128
        %481 = vxpose.xlu0.b32.cont [9/16] %v170, 128
        %482 = vxpose.xlu0.b32.cont [10/16] %v172, 128
        %483 = vxpose.xlu0.b32.cont [11/16] %v174, 128
        %484 = vxpose.xlu0.b32.cont [12/16] %v176, 128
        %485 = vxpose.xlu0.b32.cont [13/16] %v178, 128
        %486 = vxpose.xlu0.b32.cont [14/16] %v180, 128
        %487 = vxpose.xlu0.b32.cont [15/16] %v182, 128
        %488 = vxpose.xlu0.b32.end [16/16] %v184, 128
        %v489 = vpop.trf.xlu0
        %v490 = vpop.trf.xlu0
        %v491 = vpop.trf.xlu0
        %v492 = vpop.trf.xlu0
        %v493 = vpop.trf.xlu0
        %v494 = vpop.trf.xlu0
        %v495 = vpop.trf.xlu0
        %v496 = vpop.trf.xlu0
        %v497 = vpop.trf.xlu0
        %v498 = vpop.trf.xlu0
        %v499 = vpop.trf.xlu0
        %v500 = vpop.trf.xlu0
        %v501 = vpop.trf.xlu0
        %v502 = vpop.trf.xlu0
        %v503 = vpop.trf.xlu0
        %v504 = vpop.trf.xlu0
        %505 = vxpose.xlu0.b32.start [1/16] %v185, 128
        %506 = vxpose.xlu0.b32.cont [2/16] %v187, 128
        %507 = vxpose.xlu0.b32.cont [3/16] %v189, 128
        %508 = vxpose.xlu0.b32.cont [4/16] %v191, 128
        %509 = vxpose.xlu0.b32.cont [5/16] %v193, 128
        %510 = vxpose.xlu0.b32.cont [6/16] %v195, 128
        %511 = vxpose.xlu0.b32.cont [7/16] %v197, 128
        %512 = vxpose.xlu0.b32.cont [8/16] %v199, 128
        %513 = vxpose.xlu0.b32.cont [9/16] %v201, 128
        %514 = vxpose.xlu0.b32.cont [10/16] %v203, 128
        %515 = vxpose.xlu0.b32.cont [11/16] %v205, 128
        %516 = vxpose.xlu0.b32.cont [12/16] %v207, 128
        %517 = vxpose.xlu0.b32.cont [13/16] %v209, 128
        %518 = vxpose.xlu0.b32.cont [14/16] %v211, 128
        %519 = vxpose.xlu0.b32.cont [15/16] %v213, 128
        %520 = vxpose.xlu0.b32.end [16/16] %v215, 128
        %v521 = vpop.trf.xlu0
        %v522 = vpop.trf.xlu0
        %v523 = vpop.trf.xlu0
        %v524 = vpop.trf.xlu0
        %v525 = vpop.trf.xlu0
        %v526 = vpop.trf.xlu0
        %v527 = vpop.trf.xlu0
        %v528 = vpop.trf.xlu0
        %v529 = vpop.trf.xlu0
        %v530 = vpop.trf.xlu0
        %v531 = vpop.trf.xlu0
        %v532 = vpop.trf.xlu0
        %v533 = vpop.trf.xlu0
        %v534 = vpop.trf.xlu0
        %v535 = vpop.trf.xlu0
        %v536 = vpop.trf.xlu0
        %537 = vxpose.xlu0.b32.start [1/16] %v186, 128
        %538 = vxpose.xlu0.b32.cont [2/16] %v188, 128
        %539 = vxpose.xlu0.b32.cont [3/16] %v190, 128
        %540 = vxpose.xlu0.b32.cont [4/16] %v192, 128
        %541 = vxpose.xlu0.b32.cont [5/16] %v194, 128
        %542 = vxpose.xlu0.b32.cont [6/16] %v196, 128
        %543 = vxpose.xlu0.b32.cont [7/16] %v198, 128
        %544 = vxpose.xlu0.b32.cont [8/16] %v200, 128
        %545 = vxpose.xlu0.b32.cont [9/16] %v202, 128
        %546 = vxpose.xlu0.b32.cont [10/16] %v204, 128
        %547 = vxpose.xlu0.b32.cont [11/16] %v206, 128
        %548 = vxpose.xlu0.b32.cont [12/16] %v208, 128
        %549 = vxpose.xlu0.b32.cont [13/16] %v210, 128
        %550 = vxpose.xlu0.b32.cont [14/16] %v212, 128
        %551 = vxpose.xlu0.b32.cont [15/16] %v214, 128
        %552 = vxpose.xlu0.b32.end [16/16] %v216, 128
        %v553 = vpop.trf.xlu0
        %v554 = vpop.trf.xlu0
        %v555 = vpop.trf.xlu0
        %v556 = vpop.trf.xlu0
        %v557 = vpop.trf.xlu0
        %v558 = vpop.trf.xlu0
        %v559 = vpop.trf.xlu0
        %v560 = vpop.trf.xlu0
        %v561 = vpop.trf.xlu0
        %v562 = vpop.trf.xlu0
        %v563 = vpop.trf.xlu0
        %v564 = vpop.trf.xlu0
        %v565 = vpop.trf.xlu0
        %v566 = vpop.trf.xlu0
        %v567 = vpop.trf.xlu0
        %v568 = vpop.trf.xlu0
        %569 = vxpose.xlu0.b32.start [1/16] %v217, 128
        %570 = vxpose.xlu0.b32.cont [2/16] %v219, 128
        %571 = vxpose.xlu0.b32.cont [3/16] %v221, 128
        %572 = vxpose.xlu0.b32.cont [4/16] %v223, 128
        %573 = vxpose.xlu0.b32.cont [5/16] %v225, 128
        %574 = vxpose.xlu0.b32.cont [6/16] %v227, 128
        %575 = vxpose.xlu0.b32.cont [7/16] %v229, 128
        %576 = vxpose.xlu0.b32.cont [8/16] %v231, 128
        %577 = vxpose.xlu0.b32.cont [9/16] %v233, 128
        %578 = vxpose.xlu0.b32.cont [10/16] %v235, 128
        %579 = vxpose.xlu0.b32.cont [11/16] %v237, 128
        %580 = vxpose.xlu0.b32.cont [12/16] %v239, 128
        %581 = vxpose.xlu0.b32.cont [13/16] %v241, 128
        %582 = vxpose.xlu0.b32.cont [14/16] %v243, 128
        %583 = vxpose.xlu0.b32.cont [15/16] %v245, 128
        %584 = vxpose.xlu0.b32.end [16/16] %v247, 128
        %v585 = vpop.trf.xlu0
        %v586 = vpop.trf.xlu0
        %v587 = vpop.trf.xlu0
        %v588 = vpop.trf.xlu0
        %v589 = vpop.trf.xlu0
        %v590 = vpop.trf.xlu0
        %v591 = vpop.trf.xlu0
        %v592 = vpop.trf.xlu0
        %v593 = vpop.trf.xlu0
        %v594 = vpop.trf.xlu0
        %v595 = vpop.trf.xlu0
        %v596 = vpop.trf.xlu0
        %v597 = vpop.trf.xlu0
        %v598 = vpop.trf.xlu0
        %v599 = vpop.trf.xlu0
        %v600 = vpop.trf.xlu0
        %601 = vxpose.xlu0.b32.start [1/16] %v218, 128
        %602 = vxpose.xlu0.b32.cont [2/16] %v220, 128
        %603 = vxpose.xlu0.b32.cont [3/16] %v222, 128
        %604 = vxpose.xlu0.b32.cont [4/16] %v224, 128
        %605 = vxpose.xlu0.b32.cont [5/16] %v226, 128
        %606 = vxpose.xlu0.b32.cont [6/16] %v228, 128
        %607 = vxpose.xlu0.b32.cont [7/16] %v230, 128
        %608 = vxpose.xlu0.b32.cont [8/16] %v232, 128
        %609 = vxpose.xlu0.b32.cont [9/16] %v234, 128
        %610 = vxpose.xlu0.b32.cont [10/16] %v236, 128
        %611 = vxpose.xlu0.b32.cont [11/16] %v238, 128
        %612 = vxpose.xlu0.b32.cont [12/16] %v240, 128
        %613 = vxpose.xlu0.b32.cont [13/16] %v242, 128
        %614 = vxpose.xlu0.b32.cont [14/16] %v244, 128
        %615 = vxpose.xlu0.b32.cont [15/16] %v246, 128
        %616 = vxpose.xlu0.b32.end [16/16] %v248, 128
        %v617 = vpop.trf.xlu0
        %v618 = vpop.trf.xlu0
        %v619 = vpop.trf.xlu0
        %v620 = vpop.trf.xlu0
        %v621 = vpop.trf.xlu0
        %v622 = vpop.trf.xlu0
        %v623 = vpop.trf.xlu0
        %v624 = vpop.trf.xlu0
        %v625 = vpop.trf.xlu0
        %v626 = vpop.trf.xlu0
        %v627 = vpop.trf.xlu0
        %v628 = vpop.trf.xlu0
        %v629 = vpop.trf.xlu0
        %v630 = vpop.trf.xlu0
        %v631 = vpop.trf.xlu0
        %v632 = vpop.trf.xlu0
        %633 = vxpose.xlu0.b32.start [1/16] %v249, 128
        %634 = vxpose.xlu0.b32.cont [2/16] %v251, 128
        %635 = vxpose.xlu0.b32.cont [3/16] %v253, 128
        %636 = vxpose.xlu0.b32.cont [4/16] %v255, 128
        %637 = vxpose.xlu0.b32.cont [5/16] %v257, 128
        %638 = vxpose.xlu0.b32.cont [6/16] %v259, 128
        %639 = vxpose.xlu0.b32.cont [7/16] %v261, 128
        %640 = vxpose.xlu0.b32.cont [8/16] %v263, 128
        %641 = vxpose.xlu0.b32.cont [9/16] %v265, 128
        %642 = vxpose.xlu0.b32.cont [10/16] %v267, 128
        %643 = vxpose.xlu0.b32.cont [11/16] %v269, 128
        %644 = vxpose.xlu0.b32.cont [12/16] %v271, 128
        %645 = vxpose.xlu0.b32.cont [13/16] %v273, 128
        %646 = vxpose.xlu0.b32.cont [14/16] %v275, 128
        %647 = vxpose.xlu0.b32.cont [15/16] %v277, 128
        %648 = vxpose.xlu0.b32.end [16/16] %v279, 128
        %v649 = vpop.trf.xlu0
        %v650 = vpop.trf.xlu0
        %v651 = vpop.trf.xlu0
        %v652 = vpop.trf.xlu0
        %v653 = vpop.trf.xlu0
        %v654 = vpop.trf.xlu0
        %v655 = vpop.trf.xlu0
        %v656 = vpop.trf.xlu0
        %v657 = vpop.trf.xlu0
        %v658 = vpop.trf.xlu0
        %v659 = vpop.trf.xlu0
        %v660 = vpop.trf.xlu0
        %v661 = vpop.trf.xlu0
        %v662 = vpop.trf.xlu0
        %v663 = vpop.trf.xlu0
        %v664 = vpop.trf.xlu0
        %665 = vxpose.xlu0.b32.start [1/16] %v250, 128
        %666 = vxpose.xlu0.b32.cont [2/16] %v252, 128
        %667 = vxpose.xlu0.b32.cont [3/16] %v254, 128
        %668 = vxpose.xlu0.b32.cont [4/16] %v256, 128
        %669 = vxpose.xlu0.b32.cont [5/16] %v258, 128
        %670 = vxpose.xlu0.b32.cont [6/16] %v260, 128
        %671 = vxpose.xlu0.b32.cont [7/16] %v262, 128
        %672 = vxpose.xlu0.b32.cont [8/16] %v264, 128
        %673 = vxpose.xlu0.b32.cont [9/16] %v266, 128
        %674 = vxpose.xlu0.b32.cont [10/16] %v268, 128
        %675 = vxpose.xlu0.b32.cont [11/16] %v270, 128
        %676 = vxpose.xlu0.b32.cont [12/16] %v272, 128
        %677 = vxpose.xlu0.b32.cont [13/16] %v274, 128
        %678 = vxpose.xlu0.b32.cont [14/16] %v276, 128
        %679 = vxpose.xlu0.b32.cont [15/16] %v278, 128
        %680 = vxpose.xlu0.b32.end [16/16] %v280, 128
        %v681 = vpop.trf.xlu0
        %v682 = vpop.trf.xlu0
        %v683 = vpop.trf.xlu0
        %v684 = vpop.trf.xlu0
        %v685 = vpop.trf.xlu0
        %v686 = vpop.trf.xlu0
        %v687 = vpop.trf.xlu0
        %v688 = vpop.trf.xlu0
        %v689 = vpop.trf.xlu0
        %v690 = vpop.trf.xlu0
        %v691 = vpop.trf.xlu0
        %v692 = vpop.trf.xlu0
        %v693 = vpop.trf.xlu0
        %v694 = vpop.trf.xlu0
        %v695 = vpop.trf.xlu0
        %v696 = vpop.trf.xlu0
        %697 = vxpose.xlu0.b32.start [1/16] %v281, 128
        %698 = vxpose.xlu0.b32.cont [2/16] %v283, 128
        %699 = vxpose.xlu0.b32.cont [3/16] %v285, 128
        %700 = vxpose.xlu0.b32.cont [4/16] %v287, 128
        %701 = vxpose.xlu0.b32.cont [5/16] %v289, 128
        %702 = vxpose.xlu0.b32.cont [6/16] %v291, 128
        %703 = vxpose.xlu0.b32.cont [7/16] %v293, 128
        %704 = vxpose.xlu0.b32.cont [8/16] %v295, 128
        %705 = vxpose.xlu0.b32.cont [9/16] %v297, 128
        %706 = vxpose.xlu0.b32.cont [10/16] %v299, 128
        %707 = vxpose.xlu0.b32.cont [11/16] %v301, 128
        %708 = vxpose.xlu0.b32.cont [12/16] %v303, 128
        %709 = vxpose.xlu0.b32.cont [13/16] %v305, 128
        %710 = vxpose.xlu0.b32.cont [14/16] %v307, 128
        %711 = vxpose.xlu0.b32.cont [15/16] %v309, 128
        %712 = vxpose.xlu0.b32.end [16/16] %v311, 128
        %v713 = vpop.trf.xlu0
        %v714 = vpop.trf.xlu0
        %v715 = vpop.trf.xlu0
        %v716 = vpop.trf.xlu0
        %v717 = vpop.trf.xlu0
        %v718 = vpop.trf.xlu0
        %v719 = vpop.trf.xlu0
        %v720 = vpop.trf.xlu0
        %v721 = vpop.trf.xlu0
        %v722 = vpop.trf.xlu0
        %v723 = vpop.trf.xlu0
        %v724 = vpop.trf.xlu0
        %v725 = vpop.trf.xlu0
        %v726 = vpop.trf.xlu0
        %v727 = vpop.trf.xlu0
        %v728 = vpop.trf.xlu0
        %729 = vxpose.xlu0.b32.start [1/16] %v282, 128
        %730 = vxpose.xlu0.b32.cont [2/16] %v284, 128
        %731 = vxpose.xlu0.b32.cont [3/16] %v286, 128
        %732 = vxpose.xlu0.b32.cont [4/16] %v288, 128
        %733 = vxpose.xlu0.b32.cont [5/16] %v290, 128
        %734 = vxpose.xlu0.b32.cont [6/16] %v292, 128
        %735 = vxpose.xlu0.b32.cont [7/16] %v294, 128
        %736 = vxpose.xlu0.b32.cont [8/16] %v296, 128
        %737 = vxpose.xlu0.b32.cont [9/16] %v298, 128
        %738 = vxpose.xlu0.b32.cont [10/16] %v300, 128
        %739 = vxpose.xlu0.b32.cont [11/16] %v302, 128
        %740 = vxpose.xlu0.b32.cont [12/16] %v304, 128
        %741 = vxpose.xlu0.b32.cont [13/16] %v306, 128
        %742 = vxpose.xlu0.b32.cont [14/16] %v308, 128
        %743 = vxpose.xlu0.b32.cont [15/16] %v310, 128
        %744 = vxpose.xlu0.b32.end [16/16] %v312, 128
        %v745 = vpop.trf.xlu0
        %v746 = vpop.trf.xlu0
        %v747 = vpop.trf.xlu0
        %v748 = vpop.trf.xlu0
        %v749 = vpop.trf.xlu0
        %v750 = vpop.trf.xlu0
        %v751 = vpop.trf.xlu0
        %v752 = vpop.trf.xlu0
        %v753 = vpop.trf.xlu0
        %v754 = vpop.trf.xlu0
        %v755 = vpop.trf.xlu0
        %v756 = vpop.trf.xlu0
        %v757 = vpop.trf.xlu0
        %v758 = vpop.trf.xlu0
        %v759 = vpop.trf.xlu0
        %v760 = vpop.trf.xlu0
        %761 = vxpose.xlu0.b32.start [1/16] %v313, 128
        %762 = vxpose.xlu0.b32.cont [2/16] %v315, 128
        %763 = vxpose.xlu0.b32.cont [3/16] %v317, 128
        %764 = vxpose.xlu0.b32.cont [4/16] %v319, 128
        %765 = vxpose.xlu0.b32.cont [5/16] %v321, 128
        %766 = vxpose.xlu0.b32.cont [6/16] %v323, 128
        %767 = vxpose.xlu0.b32.cont [7/16] %v325, 128
        %768 = vxpose.xlu0.b32.cont [8/16] %v327, 128
        %769 = vxpose.xlu0.b32.cont [9/16] %v329, 128
        %770 = vxpose.xlu0.b32.cont [10/16] %v331, 128
        %771 = vxpose.xlu0.b32.cont [11/16] %v333, 128
        %772 = vxpose.xlu0.b32.cont [12/16] %v335, 128
        %773 = vxpose.xlu0.b32.cont [13/16] %v337, 128
        %774 = vxpose.xlu0.b32.cont [14/16] %v339, 128
        %775 = vxpose.xlu0.b32.cont [15/16] %v341, 128
        %776 = vxpose.xlu0.b32.end [16/16] %v343, 128
        %v777 = vpop.trf.xlu0
        %v778 = vpop.trf.xlu0
        %v779 = vpop.trf.xlu0
        %v780 = vpop.trf.xlu0
        %v781 = vpop.trf.xlu0
        %v782 = vpop.trf.xlu0
        %v783 = vpop.trf.xlu0
        %v784 = vpop.trf.xlu0
        %v785 = vpop.trf.xlu0
        %v786 = vpop.trf.xlu0
        %v787 = vpop.trf.xlu0
        %v788 = vpop.trf.xlu0
        %v789 = vpop.trf.xlu0
        %v790 = vpop.trf.xlu0
        %v791 = vpop.trf.xlu0
        %v792 = vpop.trf.xlu0
        %793 = vxpose.xlu0.b32.start [1/16] %v314, 128
        %794 = vxpose.xlu0.b32.cont [2/16] %v316, 128
        %795 = vxpose.xlu0.b32.cont [3/16] %v318, 128
        %796 = vxpose.xlu0.b32.cont [4/16] %v320, 128
        %797 = vxpose.xlu0.b32.cont [5/16] %v322, 128
        %798 = vxpose.xlu0.b32.cont [6/16] %v324, 128
        %799 = vxpose.xlu0.b32.cont [7/16] %v326, 128
        %800 = vxpose.xlu0.b32.cont [8/16] %v328, 128
        %801 = vxpose.xlu0.b32.cont [9/16] %v330, 128
        %802 = vxpose.xlu0.b32.cont [10/16] %v332, 128
        %803 = vxpose.xlu0.b32.cont [11/16] %v334, 128
        %804 = vxpose.xlu0.b32.cont [12/16] %v336, 128
        %805 = vxpose.xlu0.b32.cont [13/16] %v338, 128
        %806 = vxpose.xlu0.b32.cont [14/16] %v340, 128
        %807 = vxpose.xlu0.b32.cont [15/16] %v342, 128
        %808 = vxpose.xlu0.b32.end [16/16] %v344, 128
        %v809 = vpop.trf.xlu0
        %v810 = vpop.trf.xlu0
        %v811 = vpop.trf.xlu0
        %v812 = vpop.trf.xlu0
        %v813 = vpop.trf.xlu0
        %v814 = vpop.trf.xlu0
        %v815 = vpop.trf.xlu0
        %v816 = vpop.trf.xlu0
        %v817 = vpop.trf.xlu0
        %v818 = vpop.trf.xlu0
        %v819 = vpop.trf.xlu0
        %v820 = vpop.trf.xlu0
        %v821 = vpop.trf.xlu0
        %v822 = vpop.trf.xlu0
        %v823 = vpop.trf.xlu0
        %v824 = vpop.trf.xlu0
        %825 = vxpose.xlu0.b32.start [1/16] %v345, 128
        %826 = vxpose.xlu0.b32.cont [2/16] %v347, 128
        %827 = vxpose.xlu0.b32.cont [3/16] %v349, 128
        %828 = vxpose.xlu0.b32.cont [4/16] %v351, 128
        %829 = vxpose.xlu0.b32.cont [5/16] %v353, 128
        %830 = vxpose.xlu0.b32.cont [6/16] %v355, 128
        %831 = vxpose.xlu0.b32.cont [7/16] %v357, 128
        %832 = vxpose.xlu0.b32.cont [8/16] %v359, 128
        %833 = vxpose.xlu0.b32.cont [9/16] %v361, 128
        %834 = vxpose.xlu0.b32.cont [10/16] %v363, 128
        %835 = vxpose.xlu0.b32.cont [11/16] %v365, 128
        %836 = vxpose.xlu0.b32.cont [12/16] %v367, 128
        %837 = vxpose.xlu0.b32.cont [13/16] %v369, 128
        %838 = vxpose.xlu0.b32.cont [14/16] %v371, 128
        %839 = vxpose.xlu0.b32.cont [15/16] %v373, 128
        %840 = vxpose.xlu0.b32.end [16/16] %v375, 128
        %v841 = vpop.trf.xlu0
        %v842 = vpop.trf.xlu0
        %v843 = vpop.trf.xlu0
        %v844 = vpop.trf.xlu0
        %v845 = vpop.trf.xlu0
        %v846 = vpop.trf.xlu0
        %v847 = vpop.trf.xlu0
        %v848 = vpop.trf.xlu0
        %v849 = vpop.trf.xlu0
        %v850 = vpop.trf.xlu0
        %v851 = vpop.trf.xlu0
        %v852 = vpop.trf.xlu0
        %v853 = vpop.trf.xlu0
        %v854 = vpop.trf.xlu0
        %v855 = vpop.trf.xlu0
        %v856 = vpop.trf.xlu0
        %857 = vxpose.xlu0.b32.start [1/16] %v346, 128
        %858 = vxpose.xlu0.b32.cont [2/16] %v348, 128
        %859 = vxpose.xlu0.b32.cont [3/16] %v350, 128
        %860 = vxpose.xlu0.b32.cont [4/16] %v352, 128
        %861 = vxpose.xlu0.b32.cont [5/16] %v354, 128
        %862 = vxpose.xlu0.b32.cont [6/16] %v356, 128
        %863 = vxpose.xlu0.b32.cont [7/16] %v358, 128
        %864 = vxpose.xlu0.b32.cont [8/16] %v360, 128
        %865 = vxpose.xlu0.b32.cont [9/16] %v362, 128
        %866 = vxpose.xlu0.b32.cont [10/16] %v364, 128
        %867 = vxpose.xlu0.b32.cont [11/16] %v366, 128
        %868 = vxpose.xlu0.b32.cont [12/16] %v368, 128
        %869 = vxpose.xlu0.b32.cont [13/16] %v370, 128
        %870 = vxpose.xlu0.b32.cont [14/16] %v372, 128
        %871 = vxpose.xlu0.b32.cont [15/16] %v374, 128
        %872 = vxpose.xlu0.b32.end [16/16] %v376, 128
        %v873 = vpop.trf.xlu0
        %v874 = vpop.trf.xlu0
        %v875 = vpop.trf.xlu0
        %v876 = vpop.trf.xlu0
        %v877 = vpop.trf.xlu0
        %v878 = vpop.trf.xlu0
        %v879 = vpop.trf.xlu0
        %v880 = vpop.trf.xlu0
        %v881 = vpop.trf.xlu0
        %v882 = vpop.trf.xlu0
        %v883 = vpop.trf.xlu0
        %v884 = vpop.trf.xlu0
        %v885 = vpop.trf.xlu0
        %v886 = vpop.trf.xlu0
        %v887 = vpop.trf.xlu0
        %v888 = vpop.trf.xlu0
        %889 = vst [vmem:[%s112] sm:$0xff] %v393
        %890 = vst [vmem:[%s112 + $0x8] sm:$0xff] %v394
        %891 = vst [vmem:[%s112 + $0x10] sm:$0xff] %v395
        %892 = vst [vmem:[%s112 + $0x18] sm:$0xff] %v396
        %893 = vst [vmem:[%s112 + $0x20] sm:$0xff] %v397
        %894 = vst [vmem:[%s112 + $0x28] sm:$0xff] %v398
        %895 = vst [vmem:[%s112 + $0x30] sm:$0xff] %v399
        %896 = vst [vmem:[%s112 + $0x38] sm:$0xff] %v400
        %897 = vst [vmem:[%s112 + $0x40] sm:$0xff] %v401
        %898 = vst [vmem:[%s112 + $0x48] sm:$0xff] %v402
        %899 = vst [vmem:[%s112 + $0x50] sm:$0xff] %v403
        %900 = vst [vmem:[%s112 + $0x58] sm:$0xff] %v404
        %901 = vst [vmem:[%s112 + $0x60] sm:$0xff] %v405
        %902 = vst [vmem:[%s112 + $0x68] sm:$0xff] %v406
        %903 = vst [vmem:[%s112 + $0x70] sm:$0xff] %v407
        %904 = vst [vmem:[%s112 + $0x78] sm:$0xff] %v408
        %905 = vst [vmem:[%s112 + $0x80] sm:$0xff] %v425
        %906 = vst [vmem:[%s112 + $0x88] sm:$0xff] %v426
        %907 = vst [vmem:[%s112 + $0x90] sm:$0xff] %v427
        %908 = vst [vmem:[%s112 + $0x98] sm:$0xff] %v428
        %909 = vst [vmem:[%s112 + $0xa0] sm:$0xff] %v429
        %910 = vst [vmem:[%s112 + $0xa8] sm:$0xff] %v430
        %911 = vst [vmem:[%s112 + $0xb0] sm:$0xff] %v431
        %912 = vst [vmem:[%s112 + $0xb8] sm:$0xff] %v432
        %913 = vst [vmem:[%s112 + $0xc0] sm:$0xff] %v457
        %914 = vst [vmem:[%s112 + $0xc8] sm:$0xff] %v458
        %915 = vst [vmem:[%s112 + $0xd0] sm:$0xff] %v459
        %916 = vst [vmem:[%s112 + $0xd8] sm:$0xff] %v460
        %917 = vst [vmem:[%s112 + $0xe0] sm:$0xff] %v461
        %918 = vst [vmem:[%s112 + $0xe8] sm:$0xff] %v462
        %919 = vst [vmem:[%s112 + $0xf0] sm:$0xff] %v463
        %920 = vst [vmem:[%s112 + $0xf8] sm:$0xff] %v464
        %921 = vst [vmem:[%s112 + $0x100] sm:$0xff] %v465
        %922 = vst [vmem:[%s112 + $0x108] sm:$0xff] %v466
        %923 = vst [vmem:[%s112 + $0x110] sm:$0xff] %v467
        %924 = vst [vmem:[%s112 + $0x118] sm:$0xff] %v468
        %925 = vst [vmem:[%s112 + $0x120] sm:$0xff] %v469
        %926 = vst [vmem:[%s112 + $0x128] sm:$0xff] %v470
        %927 = vst [vmem:[%s112 + $0x130] sm:$0xff] %v471
        %928 = vst [vmem:[%s112 + $0x138] sm:$0xff] %v472
        %929 = vst [vmem:[%s112 + $0x140] sm:$0xff] %v489
        %930 = vst [vmem:[%s112 + $0x148] sm:$0xff] %v490
        %931 = vst [vmem:[%s112 + $0x150] sm:$0xff] %v491
        %932 = vst [vmem:[%s112 + $0x158] sm:$0xff] %v492
        %933 = vst [vmem:[%s112 + $0x160] sm:$0xff] %v493
        %934 = vst [vmem:[%s112 + $0x168] sm:$0xff] %v494
        %935 = vst [vmem:[%s112 + $0x170] sm:$0xff] %v495
        %936 = vst [vmem:[%s112 + $0x178] sm:$0xff] %v496
        %937 = vst [vmem:[%s112 + $0x180] sm:$0xff] %v521
        %938 = vst [vmem:[%s112 + $0x188] sm:$0xff] %v522
        %939 = vst [vmem:[%s112 + $0x190] sm:$0xff] %v523
        %940 = vst [vmem:[%s112 + $0x198] sm:$0xff] %v524
        %941 = vst [vmem:[%s112 + $0x1a0] sm:$0xff] %v525
        %942 = vst [vmem:[%s112 + $0x1a8] sm:$0xff] %v526
        %943 = vst [vmem:[%s112 + $0x1b0] sm:$0xff] %v527
        %944 = vst [vmem:[%s112 + $0x1b8] sm:$0xff] %v528
        %945 = vst [vmem:[%s112 + $0x1c0] sm:$0xff] %v529
        %946 = vst [vmem:[%s112 + $0x1c8] sm:$0xff] %v530
        %947 = vst [vmem:[%s112 + $0x1d0] sm:$0xff] %v531
        %948 = vst [vmem:[%s112 + $0x1d8] sm:$0xff] %v532
        %949 = vst [vmem:[%s112 + $0x1e0] sm:$0xff] %v533
        %950 = vst [vmem:[%s112 + $0x1e8] sm:$0xff] %v534
        %951 = vst [vmem:[%s112 + $0x1f0] sm:$0xff] %v535
        %952 = vst [vmem:[%s112 + $0x1f8] sm:$0xff] %v536
        %953 = vst [vmem:[%s112 + $0x200] sm:$0xff] %v553
        %954 = vst [vmem:[%s112 + $0x208] sm:$0xff] %v554
        %955 = vst [vmem:[%s112 + $0x210] sm:$0xff] %v555
        %956 = vst [vmem:[%s112 + $0x218] sm:$0xff] %v556
        %957 = vst [vmem:[%s112 + $0x220] sm:$0xff] %v557
        %958 = vst [vmem:[%s112 + $0x228] sm:$0xff] %v558
        %959 = vst [vmem:[%s112 + $0x230] sm:$0xff] %v559
        %960 = vst [vmem:[%s112 + $0x238] sm:$0xff] %v560
        %961 = vst [vmem:[%s112 + $0x240] sm:$0xff] %v585
        %962 = vst [vmem:[%s112 + $0x248] sm:$0xff] %v586
        %963 = vst [vmem:[%s112 + $0x250] sm:$0xff] %v587
        %964 = vst [vmem:[%s112 + $0x258] sm:$0xff] %v588
        %965 = vst [vmem:[%s112 + $0x260] sm:$0xff] %v589
        %966 = vst [vmem:[%s112 + $0x268] sm:$0xff] %v590
        %967 = vst [vmem:[%s112 + $0x270] sm:$0xff] %v591
        %968 = vst [vmem:[%s112 + $0x278] sm:$0xff] %v592
        %969 = vst [vmem:[%s112 + $0x280] sm:$0xff] %v593
        %970 = vst [vmem:[%s112 + $0x288] sm:$0xff] %v594
        %971 = vst [vmem:[%s112 + $0x290] sm:$0xff] %v595
        %972 = vst [vmem:[%s112 + $0x298] sm:$0xff] %v596
        %973 = vst [vmem:[%s112 + $0x2a0] sm:$0xff] %v597
        %974 = vst [vmem:[%s112 + $0x2a8] sm:$0xff] %v598
        %975 = vst [vmem:[%s112 + $0x2b0] sm:$0xff] %v599
        %976 = vst [vmem:[%s112 + $0x2b8] sm:$0xff] %v600
        %977 = vst [vmem:[%s112 + $0x2c0] sm:$0xff] %v617
        %978 = vst [vmem:[%s112 + $0x2c8] sm:$0xff] %v618
        %979 = vst [vmem:[%s112 + $0x2d0] sm:$0xff] %v619
        %980 = vst [vmem:[%s112 + $0x2d8] sm:$0xff] %v620
        %981 = vst [vmem:[%s112 + $0x2e0] sm:$0xff] %v621
        %982 = vst [vmem:[%s112 + $0x2e8] sm:$0xff] %v622
        %983 = vst [vmem:[%s112 + $0x2f0] sm:$0xff] %v623
        %984 = vst [vmem:[%s112 + $0x2f8] sm:$0xff] %v624
        %985 = vst [vmem:[%s112 + $0x300] sm:$0xff] %v649
        %986 = vst [vmem:[%s112 + $0x308] sm:$0xff] %v650
        %987 = vst [vmem:[%s112 + $0x310] sm:$0xff] %v651
        %988 = vst [vmem:[%s112 + $0x318] sm:$0xff] %v652
        %989 = vst [vmem:[%s112 + $0x320] sm:$0xff] %v653
        %990 = vst [vmem:[%s112 + $0x328] sm:$0xff] %v654
        %991 = vst [vmem:[%s112 + $0x330] sm:$0xff] %v655
        %992 = vst [vmem:[%s112 + $0x338] sm:$0xff] %v656
        %993 = vst [vmem:[%s112 + $0x340] sm:$0xff] %v657
        %994 = vst [vmem:[%s112 + $0x348] sm:$0xff] %v658
        %995 = vst [vmem:[%s112 + $0x350] sm:$0xff] %v659
        %996 = vst [vmem:[%s112 + $0x358] sm:$0xff] %v660
        %997 = vst [vmem:[%s112 + $0x360] sm:$0xff] %v661
        %998 = vst [vmem:[%s112 + $0x368] sm:$0xff] %v662
        %999 = vst [vmem:[%s112 + $0x370] sm:$0xff] %v663
        %1000 = vst [vmem:[%s112 + $0x378] sm:$0xff] %v664
        %1001 = vst [vmem:[%s112 + $0x380] sm:$0xff] %v681
        %1002 = vst [vmem:[%s112 + $0x388] sm:$0xff] %v682
        %1003 = vst [vmem:[%s112 + $0x390] sm:$0xff] %v683
        %1004 = vst [vmem:[%s112 + $0x398] sm:$0xff] %v684
        %1005 = vst [vmem:[%s112 + $0x3a0] sm:$0xff] %v685
        %1006 = vst [vmem:[%s112 + $0x3a8] sm:$0xff] %v686
        %1007 = vst [vmem:[%s112 + $0x3b0] sm:$0xff] %v687
        %1008 = vst [vmem:[%s112 + $0x3b8] sm:$0xff] %v688
        %1009 = vst [vmem:[%s112 + $0x3c0] sm:$0xff] %v713
        %1010 = vst [vmem:[%s112 + $0x3c8] sm:$0xff] %v714
        %1011 = vst [vmem:[%s112 + $0x3d0] sm:$0xff] %v715
        %1012 = vst [vmem:[%s112 + $0x3d8] sm:$0xff] %v716
        %1013 = vst [vmem:[%s112 + $0x3e0] sm:$0xff] %v717
        %1014 = vst [vmem:[%s112 + $0x3e8] sm:$0xff] %v718
        %1015 = vst [vmem:[%s112 + $0x3f0] sm:$0xff] %v719
        %1016 = vst [vmem:[%s112 + $0x3f8] sm:$0xff] %v720
        %1017 = vst [vmem:[%s112 + $0x400] sm:$0xff] %v721
        %1018 = vst [vmem:[%s112 + $0x408] sm:$0xff] %v722
        %1019 = vst [vmem:[%s112 + $0x410] sm:$0xff] %v723
        %1020 = vst [vmem:[%s112 + $0x418] sm:$0xff] %v724
        %1021 = vst [vmem:[%s112 + $0x420] sm:$0xff] %v725
        %1022 = vst [vmem:[%s112 + $0x428] sm:$0xff] %v726
        %1023 = vst [vmem:[%s112 + $0x430] sm:$0xff] %v727
        %1024 = vst [vmem:[%s112 + $0x438] sm:$0xff] %v728
        %1025 = vst [vmem:[%s112 + $0x440] sm:$0xff] %v745
        %1026 = vst [vmem:[%s112 + $0x448] sm:$0xff] %v746
        %1027 = vst [vmem:[%s112 + $0x450] sm:$0xff] %v747
        %1028 = vst [vmem:[%s112 + $0x458] sm:$0xff] %v748
        %1029 = vst [vmem:[%s112 + $0x460] sm:$0xff] %v749
        %1030 = vst [vmem:[%s112 + $0x468] sm:$0xff] %v750
        %1031 = vst [vmem:[%s112 + $0x470] sm:$0xff] %v751
        %1032 = vst [vmem:[%s112 + $0x478] sm:$0xff] %v752
        %1033 = vst [vmem:[%s112 + $0x480] sm:$0xff] %v777
        %1034 = vst [vmem:[%s112 + $0x488] sm:$0xff] %v778
        %1035 = vst [vmem:[%s112 + $0x490] sm:$0xff] %v779
        %1036 = vst [vmem:[%s112 + $0x498] sm:$0xff] %v780
        %1037 = vst [vmem:[%s112 + $0x4a0] sm:$0xff] %v781
        %1038 = vst [vmem:[%s112 + $0x4a8] sm:$0xff] %v782
        %1039 = vst [vmem:[%s112 + $0x4b0] sm:$0xff] %v783
        %1040 = vst [vmem:[%s112 + $0x4b8] sm:$0xff] %v784
        %1041 = vst [vmem:[%s112 + $0x4c0] sm:$0xff] %v785
        %1042 = vst [vmem:[%s112 + $0x4c8] sm:$0xff] %v786
        %1043 = vst [vmem:[%s112 + $0x4d0] sm:$0xff] %v787
        %1044 = vst [vmem:[%s112 + $0x4d8] sm:$0xff] %v788
        %1045 = vst [vmem:[%s112 + $0x4e0] sm:$0xff] %v789
        %1046 = vst [vmem:[%s112 + $0x4e8] sm:$0xff] %v790
        %1047 = vst [vmem:[%s112 + $0x4f0] sm:$0xff] %v791
        %1048 = vst [vmem:[%s112 + $0x4f8] sm:$0xff] %v792
        %1049 = vst [vmem:[%s112 + $0x500] sm:$0xff] %v809
        %1050 = vst [vmem:[%s112 + $0x508] sm:$0xff] %v810
        %1051 = vst [vmem:[%s112 + $0x510] sm:$0xff] %v811
        %1052 = vst [vmem:[%s112 + $0x518] sm:$0xff] %v812
        %1053 = vst [vmem:[%s112 + $0x520] sm:$0xff] %v813
        %1054 = vst [vmem:[%s112 + $0x528] sm:$0xff] %v814
        %1055 = vst [vmem:[%s112 + $0x530] sm:$0xff] %v815
        %1056 = vst [vmem:[%s112 + $0x538] sm:$0xff] %v816
        %1057 = vst [vmem:[%s112 + $0x540] sm:$0xff] %v841
        %1058 = vst [vmem:[%s112 + $0x548] sm:$0xff] %v842
        %1059 = vst [vmem:[%s112 + $0x550] sm:$0xff] %v843
        %1060 = vst [vmem:[%s112 + $0x558] sm:$0xff] %v844
        %1061 = vst [vmem:[%s112 + $0x560] sm:$0xff] %v845
        %1062 = vst [vmem:[%s112 + $0x568] sm:$0xff] %v846
        %1063 = vst [vmem:[%s112 + $0x570] sm:$0xff] %v847
        %1064 = vst [vmem:[%s112 + $0x578] sm:$0xff] %v848
        %1065 = vst [vmem:[%s112 + $0x580] sm:$0xff] %v849
        %1066 = vst [vmem:[%s112 + $0x588] sm:$0xff] %v850
        %1067 = vst [vmem:[%s112 + $0x590] sm:$0xff] %v851
        %1068 = vst [vmem:[%s112 + $0x598] sm:$0xff] %v852
        %1069 = vst [vmem:[%s112 + $0x5a0] sm:$0xff] %v853
        %1070 = vst [vmem:[%s112 + $0x5a8] sm:$0xff] %v854
        %1071 = vst [vmem:[%s112 + $0x5b0] sm:$0xff] %v855
        %1072 = vst [vmem:[%s112 + $0x5b8] sm:$0xff] %v856
        %1073 = vst [vmem:[%s112 + $0x5c0] sm:$0xff] %v873
        %1074 = vst [vmem:[%s112 + $0x5c8] sm:$0xff] %v874
        %1075 = vst [vmem:[%s112 + $0x5d0] sm:$0xff] %v875
        %1076 = vst [vmem:[%s112 + $0x5d8] sm:$0xff] %v876
        %1077 = vst [vmem:[%s112 + $0x5e0] sm:$0xff] %v877
        %1078 = vst [vmem:[%s112 + $0x5e8] sm:$0xff] %v878
        %1079 = vst [vmem:[%s112 + $0x5f0] sm:$0xff] %v879
        %1080 = vst [vmem:[%s112 + $0x5f8] sm:$0xff] %v880
        %s1081 = sand.u32 %s49, 1
        %s1082 = scalar_lea.sflag [#allocation3], %s1081
        %s1083 = sand.u32 %s49, 1
        %s1084 = smul.addr %s1083, 1536
        %s1085 = scalar_lea.vmem [#allocation2], %s1084
        // Predicated region
        $region25: #{tpu_custom_call.1} parent=23 // pred_check
          %p1086 = pneg %p59
        $region26: #{tpu_custom_call.1} parent=23 // pred_check_branch
          %1088 = sbr.rel (%p1086) target = $region28
        $region27: #{tpu_custom_call.1} parent=23 // pred_region
          %s1089 = smul.u32 8, %s15
          %s1091 = ssub.s32 24576, 24576
          %1092 = vsyncadd %s1082, %s1091
          %s1093 = smul.addr %s1089, 24
          %s1094 = smul.addr %s1093, 128
          %s1095 = scalar_lea.hbm %s1, %s1094
          %s1096 = sshll.u32 %s1085, 4
          %s1097 = int_to_ptr.vmem [resolvable:$true] %s1096
          %1102 = dma.vmem_to_hbm [thread:$0]  %s1097, 24576, %s1095, %s1082, 128, 128, 8
        $region28: #{tpu_custom_call.1} parent=23 // pred_fallthru
          _
      $region24: #{tpu_custom_call.1} parent=5 // pred_fallthru
        _
      %p1103 = scmp.le.s32.totalorder 2, %s10
      // Predicated region
      $region29: #{tpu_custom_call.1} parent=5 // pred_check
        %p1104 = pneg %p1103
      $region30: #{tpu_custom_call.1} parent=5 // pred_check_branch
        %1106 = sbr.rel (%p1104) target = $region32
      $region31: #{tpu_custom_call.1} parent=5 // pred_region
        %s1107 = ssub.s32 %s10, 2
        // Predicated region
        $region33: #{tpu_custom_call.1} parent=31 // pred_check
          %p1108 = pneg %p65
        $region34: #{tpu_custom_call.1} parent=31 // pred_check_branch
          %1110 = sbr.rel (%p1108) target = $region36
        $region35: #{tpu_custom_call.1} parent=31 // pred_region
          %s1111 = sand.u32 %s50, 1
          %s1112 = scalar_lea.sflag [#allocation3], %s1111
          %s1113 = sand.u32 %s50, 1
          %s1114 = smul.addr %s1113, 1536
          %s1115 = scalar_lea.vmem [#allocation2], %s1114
          %1116 = dma.done %s1112, 24576
        $region36: #{tpu_custom_call.1} parent=31 // pred_fallthru
          _
      $region32: #{tpu_custom_call.1} parent=5 // pred_fallthru
        _
    $region6: #{tpu_custom_call.1} parent=1 // loop_footer
      %s14 = sadd.s32 1, %s10
    $region7: #{tpu_custom_call.1} parent=1 // loop_footer_branch
      %9 = sbr.rel target = $region3
    $region8: #{tpu_custom_call.1} parent=1 // loop_exit
      _
    %1117 = vsyncpa [#allocation3], 1
    %s1118 = scalar_lea.sflag [#allocation3], 1
    %1119 = vsyncpa %s1118, 1

</llo_original>
